<compile_context>
chip_gen: v7x
topology: tpu7x:2x2x1
jax: 0.10.0
libtpu: 0.0.40
codegen_flags: <defaults>
</compile_context>

<pallas_src>
import math

import jax
import jax.numpy as jnp
from jax.experimental import pallas as pl
from jax.experimental.pallas import tpu as pltpu


def _time_encoding_kernel(x_ref, emb_ref, out_ref):
    # x_ref:   (1, TL, Dp)  sequence tile of x for batch element b.
    # emb_ref: (1, 1,  Dp)  pre-renormalized, lane-dense embedding row for b.
    # out_ref: (1, TL, Dp)
    out_ref[...] = (x_ref[...] + emb_ref[...]).astype(out_ref.dtype)


def _sequence_tile_rows(n_rows, row_bytes, itemsize, target_bytes=6 << 20):
    """Rows per grid step: ~target_bytes tiles, dtype-aware sublane rounding,
    balanced so the last grid step is not a tiny ragged remainder."""
    sub = max(8, 32 // max(1, itemsize))          # 8 f32, 16 bf16, 32 int8/fp8
    max_rows = max(1, target_bytes // max(1, row_bytes))
    if n_rows <= max_rows:
        return n_rows                             # full extent: always legal
    n_tiles = pl.cdiv(n_rows, max_rows)
    tl = pl.cdiv(n_rows, n_tiles)                 # balance across tiles
    tl = max(sub, pl.cdiv(tl, sub) * sub)         # round up to sublane multiple
    return min(tl, n_rows)


def time_encoding(x, timesteps, emb_table, *, donate_x=False):
    """x: (B, L, D), timesteps: (B,) int, emb_table: (max_time, D)."""
    B, L, D = x.shape
    max_norm = math.sqrt(D)
    itemsize = jnp.dtype(x.dtype).itemsize

    # --- hoisted gather + torch.renorm(max_norm) semantics (tiny, XLA-fused).
    rows = emb_table[timesteps.astype(jnp.int32)].astype(jnp.float32)   # (B, D)
    norms = jnp.sqrt(jnp.sum(rows * rows, axis=-1, keepdims=True))
    scale = jnp.where(norms > max_norm, max_norm / (norms + 1e-7), 1.0)
    rows = (rows * scale).astype(x.dtype)

    # --- lane-dense packing: fold R sequence positions into the lane axis so
    #     the packed last dim Dp = lcm(D, 128) is a multiple of 128.  Pad L up
    #     to a multiple of R instead of falling back to masked stores.
    repeat = 128 // math.gcd(D, 128)
    L_pad = pl.cdiv(L, repeat) * repeat
    if L_pad != L:
        x = jnp.pad(x, ((0, 0), (0, L_pad - L), (0, 0)))
    Lp, Dp = L_pad // repeat, D * repeat
    xp = x.reshape(B, Lp, Dp) if repeat > 1 else x
    rows_p = (jnp.tile(rows, (1, repeat)) if repeat > 1 else rows).reshape(B, 1, Dp)

    # --- ~6 MiB sequence tiles; ~4x tile double-buffered in+out in VMEM.
    tl = _sequence_tile_rows(Lp, Dp * itemsize, itemsize)
    n_l = pl.cdiv(Lp, tl)

    grid_spec = pltpu.PrefetchScalarGridSpec(
        num_scalar_prefetch=0,
        grid=(B, n_l),
        in_specs=[
            pl.BlockSpec((1, tl, Dp), lambda b, j: (b, j, 0)),
            pl.BlockSpec((1, 1, Dp), lambda b, j: (b, 0, 0)),
        ],
        out_specs=pl.BlockSpec((1, tl, Dp), lambda b, j: (b, j, 0)),
    )

    cost = pl.CostEstimate(
        flops=B * Lp * Dp,
        transcendentals=0,
        bytes_accessed=2 * B * Lp * Dp * itemsize + B * Dp * itemsize,
    )

    out = pl.pallas_call(
        _time_encoding_kernel,
        out_shape=jax.ShapeDtypeStruct((B, Lp, Dp), x.dtype),
        grid_spec=grid_spec,
        compiler_params=pltpu.CompilerParams(
            # Every (b, j) block is independent -> both axes parallel so v7x's
            # two TensorCores split the grid even for B == 1.
            dimension_semantics=("parallel", "parallel"),
            vmem_limit_bytes=48 << 20,
        ),
        cost_estimate=cost,
        input_output_aliases=({0: 0} if donate_x else {}),
    )(xp, rows_p)

    out = out.reshape(B, L_pad, D)
    return out[:, :L, :] if L_pad != L else out


def _reference(x, timesteps, emb_table):
    max_norm = math.sqrt(x.shape[-1])
    rows = emb_table[timesteps]                                       # (B, D)
    norms = jnp.sqrt(jnp.sum(rows * rows, axis=-1, keepdims=True))
    scale = jnp.where(norms > max_norm, max_norm / (norms + 1e-7), 1.0)
    return x + (rows * scale)[:, None, :]


if __name__ == "__main__":
    MAX_TIME = 100
    key = jax.random.PRNGKey(0)

    # 1) Small shapes consistent with the module's forward (D=32 exercises the
    #    lane-dense packing path, R=4 -> packed last dim 128).
    B, L, D = 2, 8, 32
    kx, ke, kt = jax.random.split(key, 3)
    x = jax.random.normal(kx, (B, L, D), dtype=jnp.float32)
    emb_table = jax.random.normal(ke, (MAX_TIME, D), dtype=jnp.float32)
    timesteps = jax.random.randint(kt, (B,), 0, MAX_TIME, dtype=jnp.int32)
    out = time_encoding(x, timesteps, emb_table)
    jax.block_until_ready(out)
    ref = _reference(x, timesteps, emb_table)
    assert jnp.allclose(out, ref, atol=1e-5, rtol=1e-5), "mismatch vs reference"

    # 2) Non-multiple L exercises the padded lane-dense path (no masked-store
    #    fallback anymore).
    B1, L1, D1 = 2, 7, 32
    k1x, k1e, k1t = jax.random.split(jax.random.PRNGKey(2), 3)
    x1 = jax.random.normal(k1x, (B1, L1, D1), dtype=jnp.float32)
    e1 = jax.random.normal(k1e, (MAX_TIME, D1), dtype=jnp.float32)
    t1 = jax.random.randint(k1t, (B1,), 0, MAX_TIME, dtype=jnp.int32)
    out1 = time_encoding(x1, t1, e1)
    jax.block_until_ready(out1)
    ref1 = _reference(x1, t1, e1)
    assert jnp.allclose(out1, ref1, atol=1e-5, rtol=1e-5), "mismatch (padded path)"

    # 3) A larger, 128-aligned shape that exercises the multi-tile sequence grid.
    B2, L2, D2 = 2, 16384, 256
    k2x, k2e, k2t = jax.random.split(jax.random.PRNGKey(1), 3)
    x2 = jax.random.normal(k2x, (B2, L2, D2), dtype=jnp.float32)
    e2 = jax.random.normal(k2e, (MAX_TIME, D2), dtype=jnp.float32)
    t2 = jax.random.randint(k2t, (B2,), 0, MAX_TIME, dtype=jnp.int32)
    out2 = time_encoding(x2, t2, e2)
    jax.block_until_ready(out2)
    ref2 = _reference(x2, t2, e2)
    assert jnp.allclose(out2, ref2, atol=1e-5, rtol=1e-5), "mismatch (tiled path)"

    print("KERNEL_OK")
</pallas_src>

<mosaic_0001>
module attributes {stable_mosaic.version = 11 : i64} {
  func.func @_time_encoding_kernel(%arg0: i32, %arg1: i32, %arg2: memref<1x2x128xf32, #tpu.memory_space<vmem>>, %arg3: memref<1x1x128xf32, #tpu.memory_space<vmem>>, %arg4: memref<1x2x128xf32, #tpu.memory_space<vmem>>) attributes {dimension_semantics = [#tpu.dimension_semantics<parallel>, #tpu.dimension_semantics<parallel>], iteration_bounds = array<i64: 2, 1>, scalar_prefetch = 0 : i64, scratch_operands = 0 : i64, tpu.core_type = #tpu.core_type<tc>, window_params = [{transform_indices = @transform_0, window_bounds = array<i64: 1, 2, 128>}, {transform_indices = @transform_1, window_bounds = array<i64: 1, 1, 128>}, {transform_indices = @transform_2, window_bounds = array<i64: 1, 2, 128>}]} {
    %c0 = arith.constant 0 : index
    %c0_0 = arith.constant 0 : index
    %c0_1 = arith.constant 0 : index
    %0 = vector.load %arg2[%c0, %c0_0, %c0_1] : memref<1x2x128xf32, #tpu.memory_space<vmem>>, vector<1x2x128xf32>
    %c0_2 = arith.constant 0 : index
    %c0_3 = arith.constant 0 : index
    %c0_4 = arith.constant 0 : index
    %1 = vector.load %arg3[%c0_2, %c0_3, %c0_4] : memref<1x1x128xf32, #tpu.memory_space<vmem>>, vector<1x1x128xf32>
    %2 = vector.broadcast %1 : vector<1x1x128xf32> to vector<1x2x128xf32>
    %3 = arith.addf %0, %2 : vector<1x2x128xf32>
    %c0_5 = arith.constant 0 : index
    %c0_6 = arith.constant 0 : index
    %c0_7 = arith.constant 0 : index
    %4 = vector.load %arg4[%c0_5, %c0_6, %c0_7] : memref<1x2x128xf32, #tpu.memory_space<vmem>>, vector<1x2x128xf32>
    tpu.vector_store %arg4[%c0_5, %c0_6, %c0_7], %3 {strides = array<i32>} : memref<1x2x128xf32, #tpu.memory_space<vmem>>, vector<1x2x128xf32>,
    return
  }
  func.func @transform_0(%arg0: i32, %arg1: i32) -> (i32, i32, i32) {
    %c0_i32 = arith.constant 0 : i32
    %c0_i32_0 = arith.constant 0 : i32
    return %arg0, %arg1, %c0_i32 : i32, i32, i32
  }
  func.func @transform_1(%arg0: i32, %arg1: i32) -> (i32, i32, i32) {
    %c0_i32 = arith.constant 0 : i32
    %c0_i32_0 = arith.constant 0 : i32
    %c0_i32_1 = arith.constant 0 : i32
    return %arg0, %c0_i32, %c0_i32_0 : i32, i32, i32
  }
  func.func @transform_2(%arg0: i32, %arg1: i32) -> (i32, i32, i32) {
    %c0_i32 = arith.constant 0 : i32
    %c0_i32_0 = arith.constant 0 : i32
    return %arg0, %arg1, %c0_i32 : i32, i32, i32
  }
}

</mosaic_0001>

<llo_original>
// kernel: tpu_custom_call.1
$region0: #{tpu_custom_call.1}
  #allocation0 [shape = 'u32[]', space=smem, size = 0x4, offset = 0x4, fixed_abs, tag = 'smem constant byte address 0x4 - core index']
  #allocation1 [shape = 'u32[144,128]{1,0:T(1,128)}', space=vmem, size = 0x12000, scoped, tag = 'internal scratch']
  %s0 = inlined_call_operand.hbm [shape: f32[2,2,128], index: 0, kind: input, shape index: {}]
  %s1 = inlined_call_operand.vmem [shape: f32[2,1,128], index: 1, kind: input, shape index: {}]
  %s2 = inlined_call_operand.hbm [shape: f32[2,2,128], index: 2, kind: output, shape index: {}]
  %s3 = sld [smem:[#allocation0]]
  $region45: #{tpu_custom_call.1} parent=0
    _
  %s5 = ssub.s32 1, %s3
  %s6 = scalar_select 0, %s5, %s3
  $region1: #{tpu_custom_call.1} parent=0
    #allocation2 [shape = 'u8[2048]{0}', space=vmem, size = 0x800, scoped, tag = 'input window, operand 0']
    #allocation3 [shape = 's32[2]{0}', space=sflag, size = 0x8, scoped, tag = 'scoped memory for tpu_custom_call.1']
    #allocation4 [shape = 's32[2]{0}', space=sflag, size = 0x8, scoped, tag = 'scoped memory for tpu_custom_call.1']
    #allocation5 [shape = 'u8[2048]{0}', space=vmem, size = 0x800, scoped, tag = 'output window, operand 0']
    %7 = vsyncpa [#allocation3], 0
    %s8 = scalar_lea.sflag [#allocation3], 1
    %9 = vsyncpa %s8, 0
    %10 = vsyncpa [#allocation4], 0
    %s11 = scalar_lea.sflag [#allocation4], 1
    %12 = vsyncpa %s11, 0
    loop: start=0, step=1, limit=4
    $region2: #{tpu_custom_call.1} parent=1 // loop_pre_header
      _
    $region3: #{tpu_custom_call.1} parent=1 // loop_header
      %s14 = sphi 0, %s18
      %p15 = scmp.ge.s32.totalorder %s14, 4
      %s21 = sphi 0, %s33
      %s22 = sphi 0, %s29
      %s23 = sphi 0, %s21
      %s24 = sphi 0, %s22
      %s25 = sphi 0, %s23
      %s26 = sphi 0, %s24
      %s38 = sphi 0, %s40
      %s41 = sphi 0, %s38
      %s42 = sphi 0, %s41
      %s58 = sphi 0, %s42
      %s64 = sphi 0, %s66
      %s67 = sphi 0, %s64
      %s68 = sphi 0, %s67
      %s84 = sphi 0, %s68
      %s92 = sphi 0, %s94
      %s95 = sphi 0, %s92
      %s96 = sphi 0, %s95
      %s112 = sphi 0, %s96
    $region4: #{tpu_custom_call.1} parent=1 // loop_header_branch
      %17 = sbr.rel (%p15) target = $region8
    $region5: #{tpu_custom_call.1} parent=1 // loop_body
      %s19 = ssub.s32 %s14, 1
      %s20 = ssub.s32 %s14, 2
      %s27 = sadd.s32 1, %s22
      %p28 = scmp.ge.s32.totalorder %s27, 1
      %s29 = scalar_select %p28, 0, %s27
      %s30 = sadd.s32 1, %s21
      %s31 = scalar_select %p28, %s30, %s21
      %p32 = scmp.ge.s32.totalorder %s31, 2
      %s33 = scalar_select %p32, 0, %s31
      %s34 = ssub.s32 %s21, %s33
      %s35 = ssub.s32 %s22, %s29
      %s36 = sor.u32 %s34, %s35
      %p37 = scmp.eq.s32.totalorder %s36, 0
      %s39 = sadd.s32 %s38, 1
      %s40 = scalar_select %p37, %s38, %s39
      %p43 = pneg %p37
      %p44 = scmp.eq.s32.totalorder %s14, 1
      %p45 = por %p43, %p44
      %p46 = scmp.ne.s32.totalorder %s38, %s41
      %p47 = scmp.eq.s32.totalorder %s14, 0
      %p48 = por %p46, %p47
      %p49 = scmp.ne.s32.totalorder %s38, %s41
      %p50 = scmp.eq.s32.totalorder %s19, 1
      %p51 = por %p49, %p50
      %p52 = scmp.ne.s32.totalorder %s41, %s42
      %p53 = scmp.eq.s32.totalorder %s19, 0
      %p54 = por %p52, %p53
      %p55 = scmp.ne.s32.totalorder %s41, %s42
      %p56 = scmp.eq.s32.totalorder %s20, 1
      %p57 = por %p55, %p56
      %p59 = scmp.ne.s32.totalorder %s42, %s58
      %p60 = scmp.eq.s32.totalorder %s20, 0
      %p61 = por %p59, %p60
      %s62 = ssub.s32 %s21, %s33
      %p63 = scmp.eq.s32.totalorder %s62, 0
      %s65 = sadd.s32 %s64, 1
      %s66 = scalar_select %p63, %s64, %s65
      %p69 = pneg %p63
      %p70 = scmp.eq.s32.totalorder %s14, 1
      %p71 = por %p69, %p70
      %p72 = scmp.ne.s32.totalorder %s64, %s67
      %p73 = scmp.eq.s32.totalorder %s14, 0
      %p74 = por %p72, %p73
      %p75 = scmp.ne.s32.totalorder %s64, %s67
      %p76 = scmp.eq.s32.totalorder %s19, 1
      %p77 = por %p75, %p76
      %p78 = scmp.ne.s32.totalorder %s67, %s68
      %p79 = scmp.eq.s32.totalorder %s19, 0
      %p80 = por %p78, %p79
      %p81 = scmp.ne.s32.totalorder %s67, %s68
      %p82 = scmp.eq.s32.totalorder %s20, 1
      %p83 = por %p81, %p82
      %p85 = scmp.ne.s32.totalorder %s68, %s84
      %p86 = scmp.eq.s32.totalorder %s20, 0
      %p87 = por %p85, %p86
      %s88 = ssub.s32 %s21, %s33
      %s89 = ssub.s32 %s22, %s29
      %s90 = sor.u32 %s88, %s89
      %p91 = scmp.eq.s32.totalorder %s90, 0
      %s93 = sadd.s32 %s92, 1
      %s94 = scalar_select %p91, %s92, %s93
      %p97 = pneg %p91
      %p98 = scmp.eq.s32.totalorder %s14, 1
      %p99 = por %p97, %p98
      %p100 = scmp.ne.s32.totalorder %s92, %s95
      %p101 = scmp.eq.s32.totalorder %s14, 0
      %p102 = por %p100, %p101
      %p103 = scmp.ne.s32.totalorder %s92, %s95
      %p104 = scmp.eq.s32.totalorder %s19, 1
      %p105 = por %p103, %p104
      %p106 = scmp.ne.s32.totalorder %s95, %s96
      %p107 = scmp.eq.s32.totalorder %s19, 0
      %p108 = por %p106, %p107
      %p109 = scmp.ne.s32.totalorder %s95, %s96
      %p110 = scmp.eq.s32.totalorder %s20, 1
      %p111 = por %p109, %p110
      %p113 = scmp.ne.s32.totalorder %s96, %s112
      %p114 = scmp.eq.s32.totalorder %s20, 0
      %p115 = por %p113, %p114
      %p116 = scmp.le.s32.totalorder 1, %s14
      %p117 = scmp.lt.s32.totalorder %s14, 3
      %p118 = pnand %p116, %p117
      %p119 = pneg %p118
      // Predicated region
      $region9: #{tpu_custom_call.1} parent=5 // pred_check
        _
      $region10: #{tpu_custom_call.1} parent=5 // pred_check_branch
        %121 = sbr.rel (%p118) target = $region12
      $region11: #{tpu_custom_call.1} parent=5 // pred_region
        %s122 = ssub.s32 %s14, 1
      $region12: #{tpu_custom_call.1} parent=5 // pred_fallthru
        _
      %p123 = scmp.lt.s32.totalorder %s14, 2
      // Predicated region
      $region13: #{tpu_custom_call.1} parent=5 // pred_check
        %p124 = pneg %p123
      $region14: #{tpu_custom_call.1} parent=5 // pred_check_branch
        %126 = sbr.rel (%p124) target = $region16
      $region15: #{tpu_custom_call.1} parent=5 // pred_region
        // Predicated region
        $region17: #{tpu_custom_call.1} parent=15 // pred_check
          %p127 = pneg %p48
        $region18: #{tpu_custom_call.1} parent=15 // pred_check_branch
          %129 = sbr.rel (%p127) target = $region20
        $region19: #{tpu_custom_call.1} parent=15 // pred_region
          %s130 = sand.u32 %s38, 1
          %s131 = scalar_lea.sflag [#allocation3], %s130
          %s132 = sand.u32 %s38, 1
          %s133 = smul.addr %s132, 2
          %s134 = scalar_lea.vmem [#allocation2], %s133
          %s136 = ssub.s32 32, 32
          %137 = vsyncadd %s131, %s136
          %s138 = sadd.s32 %s22, %s21
          %s139 = smul.addr %s138, 32
          %s140 = scalar_lea.hbm %s0, %s139
          %s142 = sshll.u32 %s134, 4
          %s143 = int_to_ptr.vmem [resolvable:$true] %s142
          %145 = dma.hbm_to_vmem [thread:$0]  %s140, 32, %s143, %s131
        $region20: #{tpu_custom_call.1} parent=15 // pred_fallthru
          _
        // Predicated region
        $region21: #{tpu_custom_call.1} parent=15 // pred_check
          %p146 = pneg %p74
        $region22: #{tpu_custom_call.1} parent=15 // pred_check_branch
          %148 = sbr.rel (%p146) target = $region24
        $region23: #{tpu_custom_call.1} parent=15 // pred_region
          %p149 = scmp.lt.s32.totalorder %s21, 1
          %s150 = scalar_select %p149, %s21, 1
          %s151 = scalar_lea.vmem %s1, %s150
        $region24: #{tpu_custom_call.1} parent=15 // pred_fallthru
          _
      $region16: #{tpu_custom_call.1} parent=5 // pred_fallthru
        _
      %p152 = scmp.le.s32.totalorder 1, %s14
      %p153 = scmp.lt.s32.totalorder %s14, 3
      %p154 = pnand %p152, %p153
      %p155 = pneg %p154
      // Predicated region
      $region25: #{tpu_custom_call.1} parent=5 // pred_check
        _
      $region26: #{tpu_custom_call.1} parent=5 // pred_check_branch
        %157 = sbr.rel (%p154) target = $region28
      $region27: #{tpu_custom_call.1} parent=5 // pred_region
        %s158 = ssub.s32 %s14, 1
        %s159 = sand.u32 %s41, 1
        %s160 = scalar_lea.sflag [#allocation3], %s159
        %s161 = sand.u32 %s41, 1
        %s162 = smul.addr %s161, 2
        %s163 = scalar_lea.vmem [#allocation2], %s162
        // Predicated region
        $region29: #{tpu_custom_call.1} parent=27 // pred_check
          %p164 = pneg %p54
        $region30: #{tpu_custom_call.1} parent=27 // pred_check_branch
          %166 = sbr.rel (%p164) target = $region32
        $region31: #{tpu_custom_call.1} parent=27 // pred_region
          %167 = dma.done %s160, 32
        $region32: #{tpu_custom_call.1} parent=27 // pred_fallthru
          _
        %s168 = sand.u32 %s41, 1
        %s169 = scalar_lea.sflag [#allocation3], %s168
        %s170 = sand.u32 %s41, 1
        %s171 = smul.addr %s170, 2
        %s172 = scalar_lea.vmem [#allocation2], %s171
        %p173 = pneg %p54
        %p174 = pneg %p51
        %p175 = scmp.lt.s32.totalorder %s23, 1
        %s176 = scalar_select %p175, %s23, 1
        %s177 = scalar_lea.vmem %s1, %s176
        %p178 = pneg %p80
        %p179 = pneg %p77
        %p180 = pneg %p108
        %p181 = pneg %p105
        %s182 = sand.u32 %s95, 1
        %s183 = scalar_lea.sflag [#allocation4], %s182
        %s184 = sand.u32 %s95, 1
        %s185 = smul.addr %s184, 2
        %s186 = scalar_lea.vmem [#allocation5], %s185
        %p187 = scmp.lt.s32.totalorder %s23, 1
        %s188 = scalar_select %p187, %s23, 1
        %s189 = scalar_lea.vmem %s1, %s188
        %v190 = vld [vmem:[%s163] sm:$0x3]
        %v191 = vld [vmem:[%s189] sm:$0x1]
        %v193 = vlaneseq
        %v194 = vshrl.u32 %v193, 7
        %v195 = vsub.s32 0, %v194
        %v196 = vrot.slane %v191, %v195
        %v198 = vadd.f32 %v190, %v196
        %199 = vst [vmem:[%s186] sm:$0x3] %v198
        %s200 = sand.u32 %s95, 1
        %s201 = scalar_lea.sflag [#allocation4], %s200
        %s202 = sand.u32 %s95, 1
        %s203 = smul.addr %s202, 2
        %s204 = scalar_lea.vmem [#allocation5], %s203
        // Predicated region
        $region33: #{tpu_custom_call.1} parent=27 // pred_check
          %p205 = pneg %p105
        $region34: #{tpu_custom_call.1} parent=27 // pred_check_branch
          %207 = sbr.rel (%p205) target = $region36
        $region35: #{tpu_custom_call.1} parent=27 // pred_region
          %s209 = ssub.s32 32, 32
          %210 = vsyncadd %s201, %s209
          %s211 = sadd.s32 %s24, %s23
          %s212 = smul.addr %s211, 32
          %s213 = scalar_lea.hbm %s2, %s212
          %s215 = sshll.u32 %s204, 4
          %s216 = int_to_ptr.vmem [resolvable:$true] %s215
          %218 = dma.vmem_to_hbm [thread:$0]  %s216, 32, %s213, %s201
        $region36: #{tpu_custom_call.1} parent=27 // pred_fallthru
          _
      $region28: #{tpu_custom_call.1} parent=5 // pred_fallthru
        _
      %p219 = scmp.le.s32.totalorder 2, %s14
      // Predicated region
      $region37: #{tpu_custom_call.1} parent=5 // pred_check
        %p220 = pneg %p219
      $region38: #{tpu_custom_call.1} parent=5 // pred_check_branch
        %222 = sbr.rel (%p220) target = $region40
      $region39: #{tpu_custom_call.1} parent=5 // pred_region
        %s223 = ssub.s32 %s14, 2
        // Predicated region
        $region41: #{tpu_custom_call.1} parent=39 // pred_check
          %p224 = pneg %p111
        $region42: #{tpu_custom_call.1} parent=39 // pred_check_branch
          %226 = sbr.rel (%p224) target = $region44
        $region43: #{tpu_custom_call.1} parent=39 // pred_region
          %s227 = sand.u32 %s96, 1
          %s228 = scalar_lea.sflag [#allocation4], %s227
          %s229 = sand.u32 %s96, 1
          %s230 = smul.addr %s229, 2
          %s231 = scalar_lea.vmem [#allocation5], %s230
          %232 = dma.done %s228, 32
        $region44: #{tpu_custom_call.1} parent=39 // pred_fallthru
          _
      $region40: #{tpu_custom_call.1} parent=5 // pred_fallthru
        _
    $region6: #{tpu_custom_call.1} parent=1 // loop_footer
      %s18 = sadd.s32 1, %s14
    $region7: #{tpu_custom_call.1} parent=1 // loop_footer_branch
      %13 = sbr.rel target = $region3
    $region8: #{tpu_custom_call.1} parent=1 // loop_exit
      _
    %233 = vsyncpa [#allocation3], 1
    %s234 = scalar_lea.sflag [#allocation3], 1
    %235 = vsyncpa %s234, 1
    %236 = vsyncpa [#allocation4], 1
    %s237 = scalar_lea.sflag [#allocation4], 1
    %238 = vsyncpa %s237, 1

</llo_original>
